<compile_context>
chip_gen: v7x
topology: tpu7x:2x2x1
jax: 0.10.0
libtpu: 0.0.40
codegen_flags: <defaults>
</compile_context>

<pallas_src>
import functools

import jax
import jax.numpy as jnp
from jax import lax
from jax.experimental import pallas as pl
from jax.experimental.pallas import tpu as pltpu


def _round_up(x: int, n: int) -> int:
    return (x + n - 1) // n * n


def _make_kernel(training: bool, tile_m: int, hidden: int):
    """Builds the kernel with the train/eval branch resolved at trace time."""

    def kernel(seed_ref, x_ref, w_ref, b_ref, o_ref):
        # seed_ref: SMEM int32[1] (scalar prefetch)
        # x_ref: [tile_m, hidden]   w_ref: [hidden, l_pad]   b_ref: [1, l_pad] f32
        x = x_ref[...]

        if training:
            # Counter-based hash RNG: unique global element index mixed with seed.
            row = (lax.broadcasted_iota(jnp.int32, (tile_m, hidden), 0)
                   + pl.program_id(0) * tile_m)
            col = lax.broadcasted_iota(jnp.int32, (tile_m, hidden), 1)
            idx = (row * hidden + col).astype(jnp.uint32)
            seed = seed_ref[0].astype(jnp.uint32)

            h = idx * jnp.uint32(0x9E3779B1) + seed * jnp.uint32(0x85EBCA77)
            h = h ^ (h >> 16)
            h = h * jnp.uint32(0x7FEB352D)
            h = h ^ (h >> 15)
            h = h * jnp.uint32(0x846CA68B)
            h = h ^ (h >> 16)

            # 5 independent Bernoulli(0.5) keep-bits -> combined inverted-dropout scale:
            # mean_i(keep_i * 2.0) = 0.4 * popcount(low 5 bits).
            b5 = h & jnp.uint32(0x1F)
            cnt = ((b5 & 1) + ((b5 >> 1) & 1) + ((b5 >> 2) & 1)
                   + ((b5 >> 3) & 1) + ((b5 >> 4) & 1)).astype(jnp.float32)
            x = x * (cnt * jnp.float32(0.4)).astype(x.dtype)

        acc = jnp.dot(x, w_ref[...], preferred_element_type=jnp.float32)
        o_ref[...] = (acc + b_ref[...]).astype(o_ref.dtype)

    return kernel


def classification_head(hidden_state, weight, bias, *, seed=0, training=False):
    """hidden_state: [batch, ..., hidden]; weight: [num_labels, hidden] (nn.Linear
    layout); bias: [num_labels].  Returns logits [batch, ..., num_labels]."""
    orig_shape = hidden_state.shape
    hidden = orig_shape[-1]
    num_labels = weight.shape[0]
    out_dtype = hidden_state.dtype

    x2d = hidden_state.reshape(-1, hidden)
    m = x2d.shape[0]

    # Row tiling: multiple of 8 sublanes, capped so tiles stay small even on v7x VMEM.
    tile_m = min(512, _round_up(m, 8))
    m_pad = _round_up(m, tile_m)
    # Lane-dense output slab (num_labels is tiny, e.g. 4).
    l_pad = _round_up(max(num_labels, 128), 128)

    if m_pad != m:
        x2d = jnp.pad(x2d, ((0, m_pad - m), (0, 0)))

    w_t = jnp.transpose(weight).astype(x2d.dtype)                      # [H, L]
    w_pad = jnp.pad(w_t, ((0, 0), (0, l_pad - num_labels)))            # [H, l_pad]
    b_pad = jnp.pad(bias.astype(jnp.float32),
                    (0, l_pad - num_labels)).reshape(1, l_pad)         # [1, l_pad]

    seed_arr = jnp.array([seed], dtype=jnp.int32)
    grid_m = m_pad // tile_m

    kernel = _make_kernel(training=bool(training), tile_m=tile_m, hidden=hidden)

    out = pl.pallas_call(
        kernel,
        out_shape=jax.ShapeDtypeStruct((m_pad, l_pad), out_dtype),
        grid_spec=pltpu.PrefetchScalarGridSpec(
            num_scalar_prefetch=1,
            grid=(grid_m,),
            in_specs=[
                pl.BlockSpec((tile_m, hidden), lambda i, s: (i, 0)),   # x tile
                pl.BlockSpec((hidden, l_pad), lambda i, s: (0, 0)),    # W (grid-constant)
                pl.BlockSpec((1, l_pad), lambda i, s: (0, 0)),         # bias (grid-constant)
            ],
            out_specs=pl.BlockSpec((tile_m, l_pad), lambda i, s: (i, 0)),
        ),
        compiler_params=pltpu.CompilerParams(
            dimension_semantics=("parallel",)),
    )(seed_arr, x2d, w_pad, b_pad)

    return out[:m, :num_labels].reshape(*orig_shape[:-1], num_labels)


if __name__ == "__main__":
    # Small config consistent with the module: aggregation != 'dm' -> scale = 1.
    batch, seq, hidden, num_labels = 2, 8, 32, 4

    key = jax.random.PRNGKey(0)
    k_x, k_w = jax.random.split(key)
    hidden_state = jax.random.normal(k_x, (batch, seq, hidden), dtype=jnp.float32)
    # _init_weights: weight ~ N(0, 0.01), bias = 0.
    weight = 0.01 * jax.random.normal(k_w, (num_labels, hidden), dtype=jnp.float32)
    bias = jnp.zeros((num_labels,), dtype=jnp.float32)

    # Eval mode (dropout == identity, matches module.eval()): compare vs plain JAX.
    logits_eval = classification_head(hidden_state, weight, bias, training=False)
    jax.block_until_ready(logits_eval)
    ref = hidden_state.reshape(-1, hidden) @ weight.T + bias
    ref = ref.reshape(batch, seq, num_labels)
    assert logits_eval.shape == (batch, seq, num_labels)
    # Tolerance covers MXU default-precision f32 matmul passes.
    assert jnp.allclose(logits_eval, ref, atol=1e-3, rtol=1e-2), "eval mismatch"

    # Training mode: combined 5-sample dropout scale (deterministic for a fixed seed).
    logits_train = classification_head(hidden_state, weight, bias, seed=123, training=True)
    jax.block_until_ready(logits_train)
    assert logits_train.shape == (batch, seq, num_labels)
    assert bool(jnp.all(jnp.isfinite(logits_train)))
    # Same seed -> same masks -> identical output.
    logits_train2 = classification_head(hidden_state, weight, bias, seed=123, training=True)
    jax.block_until_ready(logits_train2)
    assert jnp.allclose(logits_train, logits_train2)

    print("KERNEL_OK")
</pallas_src>

<mosaic_0001>
module attributes {stable_mosaic.version = 11 : i64} {
  func.func @kernel(%arg0: i32, %arg1: memref<1xi32, #tpu.memory_space<smem>>, %arg2: memref<16x32xf32, #tpu.memory_space<vmem>>, %arg3: memref<32x128xf32, #tpu.memory_space<vmem>>, %arg4: memref<1x128xf32, #tpu.memory_space<vmem>>, %arg5: memref<16x128xf32, #tpu.memory_space<vmem>>) attributes {dimension_semantics = [#tpu.dimension_semantics<parallel>], iteration_bounds = array<i64: 1>, scalar_prefetch = 1 : i64, scratch_operands = 0 : i64, tpu.core_type = #tpu.core_type<tc>, window_params = [{transform_indices = @transform_0, window_bounds = array<i64: 16, 32>}, {pipeline_mode = #tpu.pipeline_mode<synchronous>, transform_indices = @transform_1, window_bounds = array<i64: 32, 128>}, {pipeline_mode = #tpu.pipeline_mode<synchronous>, transform_indices = @transform_2, window_bounds = array<i64: 1, 128>}, {transform_indices = @transform_3, window_bounds = array<i64: 16, 128>}]} {
    %c0 = arith.constant 0 : index
    %c0_0 = arith.constant 0 : index
    %0 = vector.load %arg2[%c0, %c0_0] : memref<16x32xf32, #tpu.memory_space<vmem>>, vector<16x32xf32>
    %c0_1 = arith.constant 0 : index
    %c0_2 = arith.constant 0 : index
    %1 = vector.load %arg3[%c0_1, %c0_2] : memref<32x128xf32, #tpu.memory_space<vmem>>, vector<32x128xf32>
    %cst = arith.constant dense<0.000000e+00> : vector<16x128xf32>
    %2 = tpu.matmul %0, %1, %cst {dimension_numbers = #tpu.dot_dimension_numbers<[1], [0], [0], [1], [0, 0, 1, 1], [], []>} : vector<16x32xf32>, vector<32x128xf32>, vector<16x128xf32> -> vector<16x128xf32>
    %c0_3 = arith.constant 0 : index
    %c0_4 = arith.constant 0 : index
    %3 = vector.load %arg4[%c0_3, %c0_4] : memref<1x128xf32, #tpu.memory_space<vmem>>, vector<1x128xf32>
    %4 = vector.broadcast %3 : vector<1x128xf32> to vector<16x128xf32>
    %5 = arith.addf %2, %4 : vector<16x128xf32>
    %c0_5 = arith.constant 0 : index
    %c0_6 = arith.constant 0 : index
    %6 = vector.load %arg5[%c0_5, %c0_6] : memref<16x128xf32, #tpu.memory_space<vmem>>, vector<16x128xf32>
    tpu.vector_store %arg5[%c0_5, %c0_6], %5 {strides = array<i32>} : memref<16x128xf32, #tpu.memory_space<vmem>>, vector<16x128xf32>,
    return
  }
  func.func @transform_0(%arg0: i32, %arg1: memref<1xi32, #tpu.memory_space<smem>>) -> (i32, i32) {
    %c0_i32 = arith.constant 0 : i32
    %c0_i32_0 = arith.constant 0 : i32
    return %arg0, %c0_i32 : i32, i32
  }
  func.func @transform_1(%arg0: i32, %arg1: memref<1xi32, #tpu.memory_space<smem>>) -> (i32, i32) {
    %c0_i32 = arith.constant 0 : i32
    %c0_i32_0 = arith.constant 0 : i32
    %c0_i32_1 = arith.constant 0 : i32
    return %c0_i32, %c0_i32_0 : i32, i32
  }
  func.func @transform_2(%arg0: i32, %arg1: memref<1xi32, #tpu.memory_space<smem>>) -> (i32, i32) {
    %c0_i32 = arith.constant 0 : i32
    %c0_i32_0 = arith.constant 0 : i32
    %c0_i32_1 = arith.constant 0 : i32
    return %c0_i32, %c0_i32_0 : i32, i32
  }
  func.func @transform_3(%arg0: i32, %arg1: memref<1xi32, #tpu.memory_space<smem>>) -> (i32, i32) {
    %c0_i32 = arith.constant 0 : i32
    %c0_i32_0 = arith.constant 0 : i32
    return %arg0, %c0_i32 : i32, i32
  }
}

</mosaic_0001>

<llo_original>
// kernel: tpu_custom_call.1
$region0: #{tpu_custom_call.1}
  #allocation0 [shape = 'u32[]', space=smem, size = 0x4, offset = 0x4, fixed_abs, tag = 'smem constant byte address 0x4 - core index']
  #allocation1 [shape = 'u32[144,128]{1,0:T(1,128)}', space=vmem, size = 0x12000, scoped, tag = 'internal scratch']
  #allocation2 [shape = 's32[1]{0}', space=sflag, size = 0x4, scoped, tag = 'scoped memory for tpu_custom_call.1']
  #allocation3 [shape = 's32[1]{0:T(128)S(6)}', space=smem, size = 0x200, scoped, tag = 'prefetched SMEM operand 0']
  %s0 = inlined_call_operand.<no memory space> [shape: s32[1], index: 0, kind: input, shape index: {}]
  %s1 = inlined_call_operand.hbm [shape: f32[16,32], index: 1, kind: input, shape index: {}]
  %s2 = inlined_call_operand.hbm [shape: f32[32,128], index: 2, kind: input, shape index: {}]
  %s3 = inlined_call_operand.vmem [shape: f32[1,128], index: 3, kind: input, shape index: {}]
  %s4 = inlined_call_operand.hbm [shape: f32[16,128], index: 4, kind: output, shape index: {}]
  %s5 = sld [smem:[#allocation0]]
  $region30: #{tpu_custom_call.1} parent=0
    _
  %s7 = ssub.s32 1, %s5
  %s8 = scalar_select 0, %s7, %s5
  %9 = sst [smem:[#allocation3]] %s0
  $region1: #{tpu_custom_call.1} parent=0
    #allocation4 [shape = 'u8[8192]{0}', space=vmem, size = 0x2000, scoped, tag = 'input window, operand 1, single buffered']
    #allocation5 [shape = 's32[1]{0}', space=sflag, size = 0x4, scoped, tag = 'scoped memory for tpu_custom_call.1']
    #allocation6 [shape = 's32[1]{0}', space=sflag, size = 0x4, scoped, tag = 'scoped memory for tpu_custom_call.1']
    #allocation7 [shape = 'u8[16384]{0}', space=vmem, size = 0x4000, scoped, tag = 'input window, operand 2, single buffered']
    #allocation8 [shape = 's32[1]{0}', space=sflag, size = 0x4, scoped, tag = 'scoped memory for tpu_custom_call.1']
    #allocation9 [shape = 'u8[8192]{0}', space=vmem, size = 0x2000, scoped, tag = 'output window, operand 0, single buffered']
    %10 = vsyncpa [#allocation5], 0
    %11 = vsyncpa [#allocation8], 0
    %12 = vsyncpa [#allocation6], 0
    // Predicated region
    $region2: #{tpu_custom_call.1} parent=1 // pred_check
      _
    $region3: #{tpu_custom_call.1} parent=1 // pred_check_branch
      %14 = sbr.rel (0) target = $region5
    $region4: #{tpu_custom_call.1} parent=1 // pred_region
      %s16 = ssub.s32 256, 256
      %17 = vsyncadd [#allocation5], %s16
      %s18 = sshll.u32 [#allocation4], 4
      %s19 = int_to_ptr.vmem [resolvable:$true] %s18
      %24 = dma.hbm_to_vmem [thread:$0]  %s1, 256, %s19, [#allocation5], 128, 128, 8
    $region5: #{tpu_custom_call.1} parent=1 // pred_fallthru
      _
    // Predicated region
    $region6: #{tpu_custom_call.1} parent=1 // pred_check
      _
    $region7: #{tpu_custom_call.1} parent=1 // pred_check_branch
      %26 = sbr.rel (0) target = $region9
    $region8: #{tpu_custom_call.1} parent=1 // pred_region
      %s28 = ssub.s32 512, 512
      %29 = vsyncadd [#allocation8], %s28
      %s30 = sshll.u32 [#allocation7], 4
      %s31 = int_to_ptr.vmem [resolvable:$true] %s30
      %36 = dma.hbm_to_vmem [thread:$0]  %s2, 512, %s31, [#allocation8], 128, 128, 8
    $region9: #{tpu_custom_call.1} parent=1 // pred_fallthru
      _
    // Predicated region
    $region10: #{tpu_custom_call.1} parent=1 // pred_check
      _
    $region11: #{tpu_custom_call.1} parent=1 // pred_check_branch
      %38 = sbr.rel (0) target = $region13
    $region12: #{tpu_custom_call.1} parent=1 // pred_region
      _
    $region13: #{tpu_custom_call.1} parent=1 // pred_fallthru
      _
    // Predicated region
    $region14: #{tpu_custom_call.1} parent=1 // pred_check
      _
    $region15: #{tpu_custom_call.1} parent=1 // pred_check_branch
      %40 = sbr.rel (0) target = $region17
    $region16: #{tpu_custom_call.1} parent=1 // pred_region
      %41 = dma.done [#allocation5], 256
    $region17: #{tpu_custom_call.1} parent=1 // pred_fallthru
      _
    // Predicated region
    $region18: #{tpu_custom_call.1} parent=1 // pred_check
      _
    $region19: #{tpu_custom_call.1} parent=1 // pred_check_branch
      %43 = sbr.rel (0) target = $region21
    $region20: #{tpu_custom_call.1} parent=1 // pred_region
      %44 = dma.done [#allocation8], 512
    $region21: #{tpu_custom_call.1} parent=1 // pred_fallthru
      _
    %v45 = vld [vmem:[#allocation4] sm:$0xff]
    %v46 = vld [vmem:[#allocation4 + $0x8] sm:$0xff]
    %v47 = vld [vmem:[#allocation7] sm:$0xff]
    %v48 = vld [vmem:[#allocation7 + $0x8] sm:$0xff]
    %v49 = vld [vmem:[#allocation7 + $0x10] sm:$0xff]
    %v50 = vld [vmem:[#allocation7 + $0x18] sm:$0xff]
    %v51 = vld [vmem:[%s3] sm:$0x1]
    %v53 = vlaneseq
    %v54 = vshrl.u32 %v53, 7
    %v55 = vsub.s32 0, %v54
    %v56 = vrot.slane %v51, %v55
    %vm58 = vcmask 261120
    %v60 = vsel %vm58, %v45, 0
    %v63 = vsel %vm58, %v46, 0
    %65 = vmatprep.subr.mxu0 0.0
    %66 = vmatpush1.msra.mxu0 %v47
    %67 = vmatprep.subr.mxu0 0.0
    %68 = vmatpush1.msra.mxu0 %v48
    %69 = vmatprep.subr.mxu0 0.0
    %70 = vmatpush1.msra.mxu0 %v49
    %71 = vmatprep.subr.mxu0 0.0
    %72 = vmatpush1.msra.mxu0 %v50
    %73 = vmatprep.subr.mxu0 0.0
    %74 = vmatpush1.msra.mxu0 0.0
    %75 = vmatprep.subr.mxu0 0.0
    %76 = vmatpush1.msra.mxu0 0.0
    %77 = vmatprep.subr.mxu0 0.0
    %78 = vmatpush1.msra.mxu0 0.0
    %79 = vmatprep.subr.mxu0 0.0
    %80 = vmatpush1.msra.mxu0 0.0
    %81 = vmatprep.subr.mxu0 0.0
    %82 = vmatpush1.msra.mxu0 0.0
    %83 = vmatprep.subr.mxu0 0.0
    %84 = vmatpush1.msra.mxu0 0.0
    %85 = vmatprep.subr.mxu0 0.0
    %86 = vmatpush1.msra.mxu0 0.0
    %87 = vmatprep.subr.mxu0 0.0
    %88 = vmatpush1.msra.mxu0 0.0
    %89 = vmatprep.subr.mxu0 0.0
    %90 = vmatpush1.msra.mxu0 0.0
    %91 = vmatprep.subr.mxu0 0.0
    %92 = vmatpush1.msra.mxu0 0.0
    %93 = vmatprep.subr.mxu0 0.0
    %94 = vmatpush1.msra.mxu0 0.0
    %95 = vmatprep.subr.mxu0 0.0
    %96 = vmatpush1.msra.mxu0 0.0
    %97 = vmatprep.subr.mxu0 0.0
    %98 = vmatpush1.msra.mxu0 0.0
    %99 = vmatprep.subr.mxu0 0.0
    %100 = vmatpush1.msra.mxu0 0.0
    %101 = vmatprep.subr.mxu0 0.0
    %102 = vmatpush1.msra.mxu0 0.0
    %103 = vmatprep.subr.mxu0 0.0
    %104 = vmatpush1.msra.mxu0 0.0
    %105 = vmatprep.subr.mxu0 0.0
    %106 = vmatpush1.msra.mxu0 0.0
    %107 = vmatprep.subr.mxu0 0.0
    %108 = vmatpush1.msra.mxu0 0.0
    %109 = vmatprep.subr.mxu0 0.0
    %110 = vmatpush1.msra.mxu0 0.0
    %111 = vmatprep.subr.mxu0 0.0
    %112 = vmatpush1.msra.mxu0 0.0
    %113 = vmatprep.subr.mxu0 0.0
    %114 = vmatpush1.msra.mxu0 0.0
    %115 = vmatprep.subr.mxu0 0.0
    %116 = vmatpush1.msra.mxu0 0.0
    %117 = vmatprep.subr.mxu0 0.0
    %118 = vmatpush1.msra.mxu0 0.0
    %119 = vmatprep.subr.mxu0 0.0
    %120 = vmatpush1.msra.mxu0 0.0
    %121 = vmatprep.subr.mxu0 0.0
    %122 = vmatpush1.msra.mxu0 0.0
    %123 = vmatprep.subr.mxu0 0.0
    %124 = vmatpush1.msra.mxu0 0.0
    %125 = vmatprep.subr.mxu0 0.0
    %126 = vmatpush1.msra.mxu0 0.0
    %127 = vmatprep.subr.mxu0 0.0
    %128 = vmatpush1.msra.mxu0 0.0
    %129 = vmatprep.mubr.f32.mxu0 0.0
    %130 = vmatmul.mubr.f32.gmra.mrb[0].mxu0 %v60
    %v131 = vpop.f32.mrb[0].mxu0
    %v132 = vadd.f32 %v56, %v131
    %v133 = vpop.f32.mrb[0].mxu0
    %134 = vmatprep.mubr.f32.mxu0 0.0
    %135 = vmatmul.mubr.f32.gmra.mrb[0].mxu0 %v63
    %v136 = vpop.f32.mrb[0].mxu0
    %v137 = vadd.f32 %v56, %v136
    %v138 = vpop.f32.mrb[0].mxu0
    %139 = vdwg.mxu0
    %140 = vst [vmem:[#allocation9] sm:$0xff] %v132
    %141 = vst [vmem:[#allocation9 + $0x8] sm:$0xff] %v137
    // Predicated region
    $region22: #{tpu_custom_call.1} parent=1 // pred_check
      _
    $region23: #{tpu_custom_call.1} parent=1 // pred_check_branch
      %143 = sbr.rel (0) target = $region25
    $region24: #{tpu_custom_call.1} parent=1 // pred_region
      %s145 = ssub.s32 256, 256
      %146 = vsyncadd [#allocation6], %s145
      %s147 = sshll.u32 [#allocation9], 4
      %s148 = int_to_ptr.vmem [resolvable:$true] %s147
      %153 = dma.vmem_to_hbm [thread:$0]  %s148, 256, %s4, [#allocation6], 128, 128, 8
    $region25: #{tpu_custom_call.1} parent=1 // pred_fallthru
      _
    // Predicated region
    $region26: #{tpu_custom_call.1} parent=1 // pred_check
      _
    $region27: #{tpu_custom_call.1} parent=1 // pred_check_branch
      %155 = sbr.rel (0) target = $region29
    $region28: #{tpu_custom_call.1} parent=1 // pred_region
      %156 = dma.done [#allocation6], 256
    $region29: #{tpu_custom_call.1} parent=1 // pred_fallthru
      _
    %157 = vsyncpa [#allocation5], 1
    %158 = vsyncpa [#allocation8], 1
    %159 = vsyncpa [#allocation6], 1

</llo_original>
